<compile_context>
chip_gen: v7x
topology: tpu7x:2x2x1
jax: 0.10.0
libtpu: 0.0.40
codegen_flags: <defaults>
</compile_context>

<pallas_src>
import math
from functools import partial

import jax
import jax.numpy as jnp
from jax import lax
from jax.experimental import pallas as pl
from jax.experimental.pallas import tpu as pltpu

# ---- synthetic config (LayoutLMv2-like, small) ----
B = 2            # batch
S = 8            # sequence length
HIDDEN = 32      # hidden_size
NH = 4           # num_attention_heads
HD = HIDDEN // NH
ALL = NH * HD    # all_head_size

MASK_FILL = -1e30   # finite sentinel instead of -inf (avoids 0/0 NaN rows)


# ---------------------------------------------------------------------------
# Kernel 1: fused QKV projection, tiled over rows of (B*S, HIDDEN).
# ---------------------------------------------------------------------------
def _qkv_kernel(x_ref, w_ref, b_ref, q_ref, k_ref, v_ref, *, all_head):
    x = x_ref[...].astype(jnp.bfloat16)                  # (tm, H)   bf16 MXU operand
    w = w_ref[...].astype(jnp.bfloat16)                  # (H, 3*ALL) resident weights
    qkv = jnp.dot(x, w, preferred_element_type=jnp.float32) + b_ref[...]
    q_ref[...] = qkv[:, 0 * all_head:1 * all_head]       # static lane slices of the
    k_ref[...] = qkv[:, 1 * all_head:2 * all_head]       # single fused result
    v_ref[...] = qkv[:, 2 * all_head:3 * all_head]


def _pick_row_tile(m):
    # Big tiles at real sizes (256-512 rows); at the tiny demo size still split
    # into >=2 blocks so the software pipeline / megacore sharding is exercised.
    for t in (512, 256, 128, 64, 32, 16, 8):
        if m % t == 0 and m // t >= 2:
            return t
    return m


def qkv_proj(x2d, w_fused, b_fused):
    M, H = x2d.shape
    O3 = w_fused.shape[1]
    all_head = O3 // 3
    tm = _pick_row_tile(M)
    row_spec = pl.BlockSpec((tm, H), lambda i: (i, 0))
    w_spec = pl.BlockSpec((H, O3), lambda i: (0, 0))      # same block every step -> resident
    b_spec = pl.BlockSpec((1, O3), lambda i: (0, 0))
    out_spec = pl.BlockSpec((tm, all_head), lambda i: (i, 0))
    return pl.pallas_call(
        partial(_qkv_kernel, all_head=all_head),
        out_shape=(jax.ShapeDtypeStruct((M, all_head), x2d.dtype),) * 3,
        grid=(M // tm,),
        in_specs=[row_spec, w_spec, b_spec],
        out_specs=(out_spec,) * 3,
        compiler_params=pltpu.CompilerParams(
            dimension_semantics=("parallel",)),
    )(x2d, w_fused, b_fused)


# ---------------------------------------------------------------------------
# Kernel 2: attention core, one (batch, head-group) tile per grid step.
# ---------------------------------------------------------------------------
def _make_attn_kernel(hg, hd, scale, out_probs):
    def kernel(q_ref, k_ref, v_ref, bias_ref, mask_ref, ctx_ref, *probs_refs):
        # q/k/v: (S, hg*hd) lane-dense; bias: (hg, S, S); mask: (1, S)
        q = (q_ref[...] * scale).astype(jnp.bfloat16)     # scale in f32, then bf16 for MXU
        k = k_ref[...].astype(jnp.bfloat16)
        v = v_ref[...].astype(jnp.bfloat16)
        mask = mask_ref[...]                              # nonzero == masked

        ctx_parts = []
        for h in range(hg):                               # static unroll over heads
            sl = slice(h * hd, (h + 1) * hd)
            qh, kh, vh = q[:, sl], k[:, sl], v[:, sl]
            # q @ k^T without an explicit transpose: contract last dim of both.
            s = lax.dot_general(qh, kh, (((1,), (1,)), ((), ())),
                                preferred_element_type=jnp.float32)     # (S, S) f32
            s = s + bias_ref[h]                           # fused rel_pos + rel_2d_pos bias
            s = jnp.where(mask > 0.0, MASK_FILL, s)       # masked_fill, finite sentinel
            # manual f32 softmax: exp on EUP, reciprocal seed on EUP + 1 Newton step.
            m = jnp.max(s, axis=-1, keepdims=True)
            e = jnp.exp(s - m)
            l = jnp.sum(e, axis=-1, keepdims=True)
            r = pl.reciprocal(l, approx=True)
            r = r * (2.0 - l * r)                         # Newton refinement (VPU, cheap)
            p = e * r                                     # (S, S) f32 probs
            if out_probs:
                probs_refs[0][h, :, :] = p
            # dropout: identity in eval mode
            ctx_parts.append(jnp.dot(p.astype(jnp.bfloat16), vh,
                                     preferred_element_type=jnp.float32))  # (S, hd)
        # lane-dense (S, hg*hd) write-back (last dim = ALL for the full head group).
        ctx_ref[...] = jnp.concatenate(ctx_parts, axis=-1).astype(ctx_ref.dtype)
    return kernel


def attention_core(q, k, v, bias, mask, num_heads, head_dim,
                   output_attentions=False, head_group=None):
    Bn, Sn, all_head = q.shape
    hg = num_heads if head_group is None else head_group
    # NOTE: at real LayoutLMv2 sizes pick hg so hg*head_dim is a multiple of 128 and
    # the (hg, S, S) bias/probs tiles fit VMEM (~2-4 heads on v7x, 8-12 on v5e/v6e).
    assert num_heads % hg == 0
    ng = num_heads // hg
    scale = 1.0 / math.sqrt(head_dim)

    qkv_spec = pl.BlockSpec((pl.Squeezed(), Sn, hg * head_dim),
                            lambda b, g: (b, 0, g))
    bias_spec = pl.BlockSpec((pl.Squeezed(), hg, Sn, Sn),
                             lambda b, g: (b, g, 0, 0))
    mask_spec = pl.BlockSpec((pl.Squeezed(), pl.Squeezed(), 1, Sn),
                             lambda b, g: (b, 0, 0, 0))

    ctx_sds = jax.ShapeDtypeStruct((Bn, Sn, all_head), q.dtype)
    if output_attentions:
        out_shape = (ctx_sds,
                     jax.ShapeDtypeStruct((Bn, num_heads, Sn, Sn), jnp.float32))
        out_specs = (qkv_spec, bias_spec)
    else:
        out_shape = ctx_sds                 # probs never touch HBM in the fast path
        out_specs = qkv_spec

    res = pl.pallas_call(
        _make_attn_kernel(hg, head_dim, scale, output_attentions),
        out_shape=out_shape,
        grid=(Bn, ng),
        in_specs=[qkv_spec, qkv_spec, qkv_spec, bias_spec, mask_spec],
        out_specs=out_specs,
        compiler_params=pltpu.CompilerParams(
            dimension_semantics=("parallel", "parallel")),
    )(q, k, v, bias, mask)
    if output_attentions:
        return res                          # (context_layer, attention_probs)
    return (res,)                           # (context_layer,)


# ---------------------------------------------------------------------------
# Wrapper reproducing LayoutLMv2SelfAttention.forward (fast_qkv=True path).
# ---------------------------------------------------------------------------
def layoutlmv2_self_attention(hidden_states, qkv_weight, q_bias, v_bias,
                              attention_mask, rel_pos=None, rel_2d_pos=None,
                              output_attentions=False, num_heads=NH):
    Bn, Sn, Hn = hidden_states.shape
    all_head = q_bias.shape[-1]
    head_dim = all_head // num_heads

    # torch qkv_linear.weight is (3*ALL, H) with y = x @ W.T.  Fuse into a single
    # (H, 3*ALL) operand.  In real deployment pre-transpose/cache this once.
    w_fused = qkv_weight.T
    b_fused = jnp.concatenate(
        [q_bias.reshape(1, all_head),
         jnp.zeros((1, all_head), hidden_states.dtype),   # k has no bias
         v_bias.reshape(1, all_head)], axis=-1)

    x2d = hidden_states.reshape(Bn * Sn, Hn)
    q, k, v = qkv_proj(x2d, w_fused, b_fused)
    q = q.reshape(Bn, Sn, all_head)                       # metadata-only reshapes;
    k = k.reshape(Bn, Sn, all_head)                       # no head transposes in HBM
    v = v.reshape(Bn, Sn, all_head)

    # Fold relative + spatial biases into ONE (B, NH, S, S) read stream.
    if rel_pos is not None and rel_2d_pos is not None:
        bias = rel_pos + rel_2d_pos
    elif rel_pos is not None:
        bias = rel_pos
    elif rel_2d_pos is not None:
        bias = rel_2d_pos
    else:
        bias = jnp.zeros((Bn, num_heads, Sn, Sn), jnp.float32)

    # TODO(synk): training-mode attention dropout (pltpu.prng_*) not implemented;
    #             eval-mode identity only.  head_mask / cross-attention / past_kv
    #             are unused by this forward path, matching the reference module.
    return attention_core(q, k, v, bias, attention_mask, num_heads, head_dim,
                          output_attentions=output_attentions)


# ---------------------------------------------------------------------------
# Plain-JAX reference (mirrors the torch module) for correctness checking.
# ---------------------------------------------------------------------------
def reference_forward(hidden_states, qkv_weight, q_bias, v_bias,
                      attention_mask, rel_pos, rel_2d_pos):
    qkv = jnp.einsum('bsh,oh->bso', hidden_states, qkv_weight)
    q, k, v = jnp.split(qkv, 3, axis=-1)
    q = q + q_bias
    v = v + v_bias

    def t4s(t):
        return t.reshape(B, S, NH, HD).transpose(0, 2, 1, 3)

    qh, kh, vh = t4s(q), t4s(k), t4s(v)
    qh = qh / math.sqrt(HD)
    scores = jnp.einsum('bnqd,bnkd->bnqk', qh, kh)
    scores = scores + rel_pos + rel_2d_pos
    scores = jnp.where(attention_mask > 0, -jnp.inf, scores)
    probs = jax.nn.softmax(scores.astype(jnp.float32), axis=-1)
    ctx = jnp.einsum('bnqk,bnkd->bnqd', probs, vh)
    ctx = ctx.transpose(0, 2, 1, 3).reshape(B, S, ALL)
    return ctx, probs


if __name__ == "__main__":
    key = jax.random.PRNGKey(0)
    k1, k2, k3, k4, k5, k6, k7 = jax.random.split(key, 7)

    hidden_states = jax.random.normal(k1, (B, S, HIDDEN), jnp.float32)
    # fast_qkv params: qkv_linear.weight (3*ALL, HIDDEN, no bias), q_bias/v_bias (1,1,ALL)
    qkv_weight = jax.random.normal(k2, (3 * ALL, HIDDEN), jnp.float32) * 0.05
    q_bias = jax.random.normal(k3, (1, 1, ALL), jnp.float32) * 0.05
    v_bias = jax.random.normal(k4, (1, 1, ALL), jnp.float32) * 0.05
    rel_pos = jax.random.normal(k5, (B, NH, S, S), jnp.float32) * 0.1
    rel_2d_pos = jax.random.normal(k6, (B, NH, S, S), jnp.float32) * 0.1
    # attention_mask: nonzero == masked (matches masked_fill_(mask.bool(), -inf));
    # keep key 0 visible so no query row is fully masked.
    attention_mask = (jax.random.uniform(k7, (B, 1, 1, S)) > 0.8).astype(jnp.float32)
    attention_mask = attention_mask.at[:, :, :, 0].set(0.0)

    # Path 1: with attention_probs (output_attentions=True).
    ctx, probs = layoutlmv2_self_attention(
        hidden_states, qkv_weight, q_bias, v_bias, attention_mask,
        rel_pos=rel_pos, rel_2d_pos=rel_2d_pos, output_attentions=True)
    jax.block_until_ready(ctx)

    # Path 2: fast path — probs never written to HBM.
    (ctx_fast,) = layoutlmv2_self_attention(
        hidden_states, qkv_weight, q_bias, v_bias, attention_mask,
        rel_pos=rel_pos, rel_2d_pos=rel_2d_pos, output_attentions=False)
    jax.block_until_ready(ctx_fast)

    ref_ctx, ref_probs = reference_forward(
        hidden_states, qkv_weight, q_bias, v_bias, attention_mask,
        rel_pos, rel_2d_pos)

    # bf16 MXU operands + EUP reciprocal -> compare at bf16-appropriate tolerance.
    TOL = dict(rtol=2e-2, atol=2e-2)
    assert jnp.allclose(ctx, ref_ctx, **TOL)
    assert jnp.allclose(ctx_fast, ref_ctx, **TOL)
    assert jnp.allclose(probs, ref_probs, **TOL)

    print("KERNEL_OK")
</pallas_src>

<mosaic_0001>
module attributes {stable_mosaic.version = 11 : i64} {
  func.func @_qkv_kernel(%arg0: i32, %arg1: memref<8x32xf32, #tpu.memory_space<vmem>>, %arg2: memref<32x96xf32, #tpu.memory_space<vmem>>, %arg3: memref<1x96xf32, #tpu.memory_space<vmem>>, %arg4: memref<8x32xf32, #tpu.memory_space<vmem>>, %arg5: memref<8x32xf32, #tpu.memory_space<vmem>>, %arg6: memref<8x32xf32, #tpu.memory_space<vmem>>) attributes {dimension_semantics = [#tpu.dimension_semantics<parallel>], iteration_bounds = array<i64: 2>, scalar_prefetch = 0 : i64, scratch_operands = 0 : i64, tpu.core_type = #tpu.core_type<tc>, window_params = [{transform_indices = @transform_0, window_bounds = array<i64: 8, 32>}, {pipeline_mode = #tpu.pipeline_mode<synchronous>, transform_indices = @transform_1, window_bounds = array<i64: 32, 96>}, {pipeline_mode = #tpu.pipeline_mode<synchronous>, transform_indices = @transform_2, window_bounds = array<i64: 1, 96>}, {transform_indices = @transform_3, window_bounds = array<i64: 8, 32>}, {transform_indices = @transform_4, window_bounds = array<i64: 8, 32>}, {transform_indices = @transform_5, window_bounds = array<i64: 8, 32>}]} {
    %c0 = arith.constant 0 : index
    %c0_0 = arith.constant 0 : index
    %0 = vector.load %arg1[%c0, %c0_0] : memref<8x32xf32, #tpu.memory_space<vmem>>, vector<8x32xf32>
    %1 = arith.truncf %0 : vector<8x32xf32> to vector<8x32xbf16>
    %c0_1 = arith.constant 0 : index
    %c0_2 = arith.constant 0 : index
    %2 = vector.load %arg2[%c0_1, %c0_2] : memref<32x96xf32, #tpu.memory_space<vmem>>, vector<32x96xf32>
    %3 = arith.truncf %2 : vector<32x96xf32> to vector<32x96xbf16>
    %cst = arith.constant dense<0.000000e+00> : vector<8x96xf32>
    %4 = tpu.matmul %1, %3, %cst {dimension_numbers = #tpu.dot_dimension_numbers<[1], [0], [0], [1], [0, 0, 1, 1], [], []>} : vector<8x32xbf16>, vector<32x96xbf16>, vector<8x96xf32> -> vector<8x96xf32>
    %c0_3 = arith.constant 0 : index
    %c0_4 = arith.constant 0 : index
    %5 = vector.load %arg3[%c0_3, %c0_4] : memref<1x96xf32, #tpu.memory_space<vmem>>, vector<1x96xf32>
    %6 = vector.broadcast %5 : vector<1x96xf32> to vector<8x96xf32>
    %7 = arith.addf %4, %6 : vector<8x96xf32>
    %8 = vector.extract_strided_slice %7 {offsets = [0, 0], sizes = [8, 32], strides = [1, 1]} : vector<8x96xf32> to vector<8x32xf32>
    %c0_5 = arith.constant 0 : index
    %c0_6 = arith.constant 0 : index
    %9 = vector.load %arg4[%c0_5, %c0_6] : memref<8x32xf32, #tpu.memory_space<vmem>>, vector<8x32xf32>
    tpu.vector_store %arg4[%c0_5, %c0_6], %8 {strides = array<i32>} : memref<8x32xf32, #tpu.memory_space<vmem>>, vector<8x32xf32>,
    %10 = vector.extract_strided_slice %7 {offsets = [0, 32], sizes = [8, 32], strides = [1, 1]} : vector<8x96xf32> to vector<8x32xf32>
    %c0_7 = arith.constant 0 : index
    %c0_8 = arith.constant 0 : index
    %11 = vector.load %arg5[%c0_7, %c0_8] : memref<8x32xf32, #tpu.memory_space<vmem>>, vector<8x32xf32>
    tpu.vector_store %arg5[%c0_7, %c0_8], %10 {strides = array<i32>} : memref<8x32xf32, #tpu.memory_space<vmem>>, vector<8x32xf32>,
    %12 = vector.extract_strided_slice %7 {offsets = [0, 64], sizes = [8, 32], strides = [1, 1]} : vector<8x96xf32> to vector<8x32xf32>
    %c0_9 = arith.constant 0 : index
    %c0_10 = arith.constant 0 : index
    %13 = vector.load %arg6[%c0_9, %c0_10] : memref<8x32xf32, #tpu.memory_space<vmem>>, vector<8x32xf32>
    tpu.vector_store %arg6[%c0_9, %c0_10], %12 {strides = array<i32>} : memref<8x32xf32, #tpu.memory_space<vmem>>, vector<8x32xf32>,
    return
  }
  func.func @transform_0(%arg0: i32) -> (i32, i32) {
    %c0_i32 = arith.constant 0 : i32
    %c0_i32_0 = arith.constant 0 : i32
    return %arg0, %c0_i32 : i32, i32
  }
  func.func @transform_1(%arg0: i32) -> (i32, i32) {
    %c0_i32 = arith.constant 0 : i32
    %c0_i32_0 = arith.constant 0 : i32
    %c0_i32_1 = arith.constant 0 : i32
    return %c0_i32, %c0_i32_0 : i32, i32
  }
  func.func @transform_2(%arg0: i32) -> (i32, i32) {
    %c0_i32 = arith.constant 0 : i32
    %c0_i32_0 = arith.constant 0 : i32
    %c0_i32_1 = arith.constant 0 : i32
    return %c0_i32, %c0_i32_0 : i32, i32
  }
  func.func @transform_3(%arg0: i32) -> (i32, i32) {
    %c0_i32 = arith.constant 0 : i32
    %c0_i32_0 = arith.constant 0 : i32
    return %arg0, %c0_i32 : i32, i32
  }
  func.func @transform_4(%arg0: i32) -> (i32, i32) {
    %c0_i32 = arith.constant 0 : i32
    %c0_i32_0 = arith.constant 0 : i32
    return %arg0, %c0_i32 : i32, i32
  }
  func.func @transform_5(%arg0: i32) -> (i32, i32) {
    %c0_i32 = arith.constant 0 : i32
    %c0_i32_0 = arith.constant 0 : i32
    return %arg0, %c0_i32 : i32, i32
  }
}

</mosaic_0001>

<llo_original>
// kernel: tpu_custom_call.1
$region0: #{tpu_custom_call.1}
  #allocation0 [shape = 'u32[]', space=smem, size = 0x4, offset = 0x4, fixed_abs, tag = 'smem constant byte address 0x4 - core index']
  #allocation1 [shape = 'u32[144,128]{1,0:T(1,128)}', space=vmem, size = 0x12000, scoped, tag = 'internal scratch']
  %s0 = inlined_call_operand.hbm [shape: f32[16,32], index: 0, kind: input, shape index: {}]
  %s1 = inlined_call_operand.hbm [shape: f32[32,96], index: 1, kind: input, shape index: {}]
  %s2 = inlined_call_operand.vmem [shape: f32[1,96], index: 2, kind: input, shape index: {}]
  %s3 = inlined_call_operand.hbm [shape: f32[16,32], index: 3, kind: output, shape index: {0}]
  %s4 = inlined_call_operand.hbm [shape: f32[16,32], index: 4, kind: output, shape index: {1}]
  %s5 = inlined_call_operand.hbm [shape: f32[16,32], index: 5, kind: output, shape index: {2}]
  %6 = xla_tuple %s3, %s4, %s5
  %s7 = sld [smem:[#allocation0]]
  $region69: #{tpu_custom_call.1} parent=0
    _
  %s9 = ssub.s32 1, %s7
  %s10 = scalar_select 0, %s9, %s7
  $region1: #{tpu_custom_call.1} parent=0
    #allocation2 [shape = 'u8[8192]{0}', space=vmem, size = 0x2000, scoped, tag = 'input window, operand 0']
    #allocation3 [shape = 's32[2]{0}', space=sflag, size = 0x8, scoped, tag = 'scoped memory for tpu_custom_call.1']
    #allocation4 [shape = 's32[2]{0}', space=sflag, size = 0x8, scoped, tag = 'scoped memory for tpu_custom_call.1']
    #allocation5 [shape = 'u8[16384]{0}', space=vmem, size = 0x4000, scoped, tag = 'input window, operand 1, single buffered']
    #allocation6 [shape = 's32[1]{0}', space=sflag, size = 0x4, scoped, tag = 'scoped memory for tpu_custom_call.1']
    #allocation7 [shape = 'u8[8192]{0}', space=vmem, size = 0x2000, scoped, tag = 'output window, operand 0']
    #allocation8 [shape = 'u8[8192]{0}', space=vmem, size = 0x2000, scoped, tag = 'output window, operand 1']
    #allocation9 [shape = 's32[2]{0}', space=sflag, size = 0x8, scoped, tag = 'scoped memory for tpu_custom_call.1']
    #allocation10 [shape = 'u8[8192]{0}', space=vmem, size = 0x2000, scoped, tag = 'output window, operand 2']
    %11 = vsyncpa [#allocation3], 0
    %s12 = scalar_lea.sflag [#allocation3], 1
    %13 = vsyncpa %s12, 0
    %14 = vsyncpa [#allocation6], 0
    %15 = vsyncpa [#allocation4], 0
    %s16 = scalar_lea.sflag [#allocation4], 1
    %17 = vsyncpa %s16, 0
    %18 = vsyncpa [#allocation9], 0
    %s19 = scalar_lea.sflag [#allocation9], 1
    %20 = vsyncpa %s19, 0
    loop: start=0, step=1, limit=4
    $region2: #{tpu_custom_call.1} parent=1 // loop_pre_header
      _
    $region3: #{tpu_custom_call.1} parent=1 // loop_header
      %s22 = sphi 0, %s26
      %p23 = scmp.ge.s32.totalorder %s22, 4
      %s32 = sphi 0, %s34
      %s35 = sphi 0, %s32
      %s36 = sphi 0, %s35
      %s52 = sphi 0, %s36
      %s56 = sphi 0, %s56
      %s58 = sphi 0, %s56
      %s59 = sphi 0, %s58
      %s73 = sphi 0, %s59
      %s77 = sphi 0, %s77
      %s79 = sphi 0, %s77
      %s80 = sphi 0, %s79
      %s94 = sphi 0, %s80
      %s100 = sphi 0, %s102
      %s103 = sphi 0, %s100
      %s104 = sphi 0, %s103
      %s120 = sphi 0, %s104
      %s126 = sphi 0, %s128
      %s129 = sphi 0, %s126
      %s130 = sphi 0, %s129
      %s146 = sphi 0, %s130
      %s152 = sphi 0, %s154
      %s155 = sphi 0, %s152
      %s156 = sphi 0, %s155
      %s172 = sphi 0, %s156
    $region4: #{tpu_custom_call.1} parent=1 // loop_header_branch
      %25 = sbr.rel (%p23) target = $region8
    $region5: #{tpu_custom_call.1} parent=1 // loop_body
      %s27 = ssub.s32 %s22, 1
      %s28 = ssub.s32 %s22, 2
      %s29 = sadd.s32 %s22, 1
      %s30 = ssub.s32 %s22, %s29
      %p31 = scmp.eq.s32.totalorder %s30, 0
      %s33 = sadd.s32 %s32, 1
      %s34 = scalar_select %p31, %s32, %s33
      %p37 = pneg %p31
      %p38 = scmp.eq.s32.totalorder %s22, 1
      %p39 = por %p37, %p38
      %p40 = scmp.ne.s32.totalorder %s32, %s35
      %p41 = scmp.eq.s32.totalorder %s22, 0
      %p42 = por %p40, %p41
      %p43 = scmp.ne.s32.totalorder %s32, %s35
      %p44 = scmp.eq.s32.totalorder %s27, 1
      %p45 = por %p43, %p44
      %p46 = scmp.ne.s32.totalorder %s35, %s36
      %p47 = scmp.eq.s32.totalorder %s27, 0
      %p48 = por %p46, %p47
      %p49 = scmp.ne.s32.totalorder %s35, %s36
      %p50 = scmp.eq.s32.totalorder %s28, 1
      %p51 = por %p49, %p50
      %p53 = scmp.ne.s32.totalorder %s36, %s52
      %p54 = scmp.eq.s32.totalorder %s28, 0
      %p55 = por %p53, %p54
      %s57 = sadd.s32 %s56, 1
      %p60 = scmp.eq.s32.totalorder %s22, 1
      %p61 = scmp.ne.s32.totalorder %s56, %s58
      %p62 = scmp.eq.s32.totalorder %s22, 0
      %p63 = por %p61, %p62
      %p64 = scmp.ne.s32.totalorder %s56, %s58
      %p65 = scmp.eq.s32.totalorder %s27, 1
      %p66 = por %p64, %p65
      %p67 = scmp.ne.s32.totalorder %s58, %s59
      %p68 = scmp.eq.s32.totalorder %s27, 0
      %p69 = por %p67, %p68
      %p70 = scmp.ne.s32.totalorder %s58, %s59
      %p71 = scmp.eq.s32.totalorder %s28, 1
      %p72 = por %p70, %p71
      %p74 = scmp.ne.s32.totalorder %s59, %s73
      %p75 = scmp.eq.s32.totalorder %s28, 0
      %p76 = por %p74, %p75
      %s78 = sadd.s32 %s77, 1
      %p81 = scmp.eq.s32.totalorder %s22, 1
      %p82 = scmp.ne.s32.totalorder %s77, %s79
      %p83 = scmp.eq.s32.totalorder %s22, 0
      %p84 = por %p82, %p83
      %p85 = scmp.ne.s32.totalorder %s77, %s79
      %p86 = scmp.eq.s32.totalorder %s27, 1
      %p87 = por %p85, %p86
      %p88 = scmp.ne.s32.totalorder %s79, %s80
      %p89 = scmp.eq.s32.totalorder %s27, 0
      %p90 = por %p88, %p89
      %p91 = scmp.ne.s32.totalorder %s79, %s80
      %p92 = scmp.eq.s32.totalorder %s28, 1
      %p93 = por %p91, %p92
      %p95 = scmp.ne.s32.totalorder %s80, %s94
      %p96 = scmp.eq.s32.totalorder %s28, 0
      %p97 = por %p95, %p96
      %s98 = ssub.s32 %s22, %s29
      %p99 = scmp.eq.s32.totalorder %s98, 0
      %s101 = sadd.s32 %s100, 1
      %s102 = scalar_select %p99, %s100, %s101
      %p105 = pneg %p99
      %p106 = scmp.eq.s32.totalorder %s22, 1
      %p107 = por %p105, %p106
      %p108 = scmp.ne.s32.totalorder %s100, %s103
      %p109 = scmp.eq.s32.totalorder %s22, 0
      %p110 = por %p108, %p109
      %p111 = scmp.ne.s32.totalorder %s100, %s103
      %p112 = scmp.eq.s32.totalorder %s27, 1
      %p113 = por %p111, %p112
      %p114 = scmp.ne.s32.totalorder %s103, %s104
      %p115 = scmp.eq.s32.totalorder %s27, 0
      %p116 = por %p114, %p115
      %p117 = scmp.ne.s32.totalorder %s103, %s104
      %p118 = scmp.eq.s32.totalorder %s28, 1
      %p119 = por %p117, %p118
      %p121 = scmp.ne.s32.totalorder %s104, %s120
      %p122 = scmp.eq.s32.totalorder %s28, 0
      %p123 = por %p121, %p122
      %s124 = ssub.s32 %s22, %s29
      %p125 = scmp.eq.s32.totalorder %s124, 0
      %s127 = sadd.s32 %s126, 1
      %s128 = scalar_select %p125, %s126, %s127
      %p131 = pneg %p125
      %p132 = scmp.eq.s32.totalorder %s22, 1
      %p133 = por %p131, %p132
      %p134 = scmp.ne.s32.totalorder %s126, %s129
      %p135 = scmp.eq.s32.totalorder %s22, 0
      %p136 = por %p134, %p135
      %p137 = scmp.ne.s32.totalorder %s126, %s129
      %p138 = scmp.eq.s32.totalorder %s27, 1
      %p139 = por %p137, %p138
      %p140 = scmp.ne.s32.totalorder %s129, %s130
      %p141 = scmp.eq.s32.totalorder %s27, 0
      %p142 = por %p140, %p141
      %p143 = scmp.ne.s32.totalorder %s129, %s130
      %p144 = scmp.eq.s32.totalorder %s28, 1
      %p145 = por %p143, %p144
      %p147 = scmp.ne.s32.totalorder %s130, %s146
      %p148 = scmp.eq.s32.totalorder %s28, 0
      %p149 = por %p147, %p148
      %s150 = ssub.s32 %s22, %s29
      %p151 = scmp.eq.s32.totalorder %s150, 0
      %s153 = sadd.s32 %s152, 1
      %s154 = scalar_select %p151, %s152, %s153
      %p157 = pneg %p151
      %p158 = scmp.eq.s32.totalorder %s22, 1
      %p159 = por %p157, %p158
      %p160 = scmp.ne.s32.totalorder %s152, %s155
      %p161 = scmp.eq.s32.totalorder %s22, 0
      %p162 = por %p160, %p161
      %p163 = scmp.ne.s32.totalorder %s152, %s155
      %p164 = scmp.eq.s32.totalorder %s27, 1
      %p165 = por %p163, %p164
      %p166 = scmp.ne.s32.totalorder %s155, %s156
      %p167 = scmp.eq.s32.totalorder %s27, 0
      %p168 = por %p166, %p167
      %p169 = scmp.ne.s32.totalorder %s155, %s156
      %p170 = scmp.eq.s32.totalorder %s28, 1
      %p171 = por %p169, %p170
      %p173 = scmp.ne.s32.totalorder %s156, %s172
      %p174 = scmp.eq.s32.totalorder %s28, 0
      %p175 = por %p173, %p174
      %p176 = scmp.le.s32.totalorder 1, %s22
      %p177 = scmp.lt.s32.totalorder %s22, 3
      %p178 = pnand %p176, %p177
      %p179 = pneg %p178
      // Predicated region
      $region9: #{tpu_custom_call.1} parent=5 // pred_check
        _
      $region10: #{tpu_custom_call.1} parent=5 // pred_check_branch
        %181 = sbr.rel (%p178) target = $region12
      $region11: #{tpu_custom_call.1} parent=5 // pred_region
        %s182 = ssub.s32 %s22, 1
        // Predicated region
        $region13: #{tpu_custom_call.1} parent=11 // pred_check
          %p183 = pneg %p69
        $region14: #{tpu_custom_call.1} parent=11 // pred_check_branch
          %185 = sbr.rel (%p183) target = $region16
        $region15: #{tpu_custom_call.1} parent=11 // pred_region
          %s187 = ssub.s32 512, 512
          %188 = vsyncadd [#allocation6], %s187
          %s189 = sshll.u32 [#allocation5], 4
          %s190 = int_to_ptr.vmem [resolvable:$true] %s189
          %195 = dma.hbm_to_vmem [thread:$0]  %s1, 512, %s190, [#allocation6], 128, 128, 8
        $region16: #{tpu_custom_call.1} parent=11 // pred_fallthru
          _
        // Predicated region
        $region17: #{tpu_custom_call.1} parent=11 // pred_check
          %p196 = pneg %p90
        $region18: #{tpu_custom_call.1} parent=11 // pred_check_branch
          %198 = sbr.rel (%p196) target = $region20
        $region19: #{tpu_custom_call.1} parent=11 // pred_region
          _
        $region20: #{tpu_custom_call.1} parent=11 // pred_fallthru
          _
      $region12: #{tpu_custom_call.1} parent=5 // pred_fallthru
        _
      %p199 = scmp.lt.s32.totalorder %s22, 2
      // Predicated region
      $region21: #{tpu_custom_call.1} parent=5 // pred_check
        %p200 = pneg %p199
      $region22: #{tpu_custom_call.1} parent=5 // pred_check_branch
        %202 = sbr.rel (%p200) target = $region24
      $region23: #{tpu_custom_call.1} parent=5 // pred_region
        // Predicated region
        $region25: #{tpu_custom_call.1} parent=23 // pred_check
          %p203 = pneg %p42
        $region26: #{tpu_custom_call.1} parent=23 // pred_check_branch
          %205 = sbr.rel (%p203) target = $region28
        $region27: #{tpu_custom_call.1} parent=23 // pred_region
          %s206 = sand.u32 %s32, 1
          %s207 = scalar_lea.sflag [#allocation3], %s206
          %s208 = sand.u32 %s32, 1
          %s209 = smul.addr %s208, 8
          %s210 = scalar_lea.vmem [#allocation2], %s209
          %s212 = ssub.s32 128, 128
          %213 = vsyncadd %s207, %s212
          %s214 = smul.addr %s22, 128
          %s215 = scalar_lea.hbm %s0, %s214
          %s217 = sshll.u32 %s210, 4
          %s218 = int_to_ptr.vmem [resolvable:$true] %s217
          %220 = dma.hbm_to_vmem [thread:$0]  %s215, 128, %s218, %s207
        $region28: #{tpu_custom_call.1} parent=23 // pred_fallthru
          _
      $region24: #{tpu_custom_call.1} parent=5 // pred_fallthru
        _
      %p221 = scmp.le.s32.totalorder 1, %s22
      %p222 = scmp.lt.s32.totalorder %s22, 3
      %p223 = pnand %p221, %p222
      %p224 = pneg %p223
      // Predicated region
      $region29: #{tpu_custom_call.1} parent=5 // pred_check
        _
      $region30: #{tpu_custom_call.1} parent=5 // pred_check_branch
        %226 = sbr.rel (%p223) target = $region32
      $region31: #{tpu_custom_call.1} parent=5 // pred_region
        %s227 = ssub.s32 %s22, 1
        %s228 = sand.u32 %s35, 1
        %s229 = scalar_lea.sflag [#allocation3], %s228
        %s230 = sand.u32 %s35, 1
        %s231 = smul.addr %s230, 8
        %s232 = scalar_lea.vmem [#allocation2], %s231
        // Predicated region
        $region33: #{tpu_custom_call.1} parent=31 // pred_check
          %p233 = pneg %p48
        $region34: #{tpu_custom_call.1} parent=31 // pred_check_branch
          %235 = sbr.rel (%p233) target = $region36
        $region35: #{tpu_custom_call.1} parent=31 // pred_region
          %236 = dma.done %s229, 128
        $region36: #{tpu_custom_call.1} parent=31 // pred_fallthru
          _
        // Predicated region
        $region37: #{tpu_custom_call.1} parent=31 // pred_check
          %p237 = pneg %p69
        $region38: #{tpu_custom_call.1} parent=31 // pred_check_branch
          %239 = sbr.rel (%p237) target = $region40
        $region39: #{tpu_custom_call.1} parent=31 // pred_region
          %240 = dma.done [#allocation6], 512
        $region40: #{tpu_custom_call.1} parent=31 // pred_fallthru
          _
        %s241 = sand.u32 %s35, 1
        %s242 = scalar_lea.sflag [#allocation3], %s241
        %s243 = sand.u32 %s35, 1
        %s244 = smul.addr %s243, 8
        %s245 = scalar_lea.vmem [#allocation2], %s244
        %p246 = pneg %p48
        %p247 = pneg %p45
        %p248 = pneg %p69
        %p249 = pneg %p66
        %p250 = pneg %p90
        %p251 = pneg %p87
        %p252 = pneg %p116
        %p253 = pneg %p113
        %s254 = sand.u32 %s103, 1
        %s255 = scalar_lea.sflag [#allocation4], %s254
        %s256 = sand.u32 %s103, 1
        %s257 = smul.addr %s256, 8
        %s258 = scalar_lea.vmem [#allocation7], %s257
        %p259 = pneg %p142
        %p260 = pneg %p139
        %s261 = sand.u32 %s27, 1
        %s262 = scalar_lea.sflag [#allocation9], %s261
        %s263 = sand.u32 %s129, 1
        %s264 = smul.addr %s263, 8
        %s265 = scalar_lea.vmem [#allocation8], %s264
        %p266 = pneg %p168
        %p267 = pneg %p165
        %s268 = sand.u32 %s27, 1
        %s269 = scalar_lea.sflag [#allocation9], %s268
        %s270 = sand.u32 %s155, 1
        %s271 = smul.addr %s270, 8
        %s272 = scalar_lea.vmem [#allocation10], %s271
        %v274 = vld [vmem:[%s232] sm:$0xff]
        %v275 = vpack.c.bf16 %v274, %v274
        %v276 = vld [vmem:[#allocation5] sm:$0xff]
        %v277 = vld [vmem:[#allocation5 + $0x8] sm:$0xff]
        %v278 = vld [vmem:[#allocation5 + $0x10] sm:$0xff]
        %v279 = vld [vmem:[#allocation5 + $0x18] sm:$0xff]
        %v280 = vpack.c.bf16 %v277, %v276
        %v281 = vpack.c.bf16 %v279, %v278
        %v282 = vld [vmem:[%s2] sm:$0x1]
        %v284 = vlaneseq
        %v285 = vshrl.u32 %v284, 7
        %v286 = vsub.s32 0, %v285
        %v287 = vrot.slane %v282, %v286
        %vm289 = vcmask 261120
        %v291 = vsel %vm289, %v275, 0
        %293 = vmatprep.subr.bf16.mxu0 0
        %294 = vmatpush1.bf16.msra.mxu0 %v280
        %295 = vmatprep.subr.bf16.mxu0 0
        %296 = vmatpush1.bf16.msra.mxu0 %v281
        %297 = vmatprep.subr.bf16.mxu0 0
        %298 = vmatpush1.bf16.msra.mxu0 0
        %299 = vmatprep.subr.bf16.mxu0 0
        %300 = vmatpush1.bf16.msra.mxu0 0
        %301 = vmatprep.subr.bf16.mxu0 0
        %302 = vmatpush1.bf16.msra.mxu0 0
        %303 = vmatprep.subr.bf16.mxu0 0
        %304 = vmatpush1.bf16.msra.mxu0 0
        %305 = vmatprep.subr.bf16.mxu0 0
        %306 = vmatpush1.bf16.msra.mxu0 0
        %307 = vmatprep.subr.bf16.mxu0 0
        %308 = vmatpush1.bf16.msra.mxu0 0
        %309 = vmatprep.subr.bf16.mxu0 0
        %310 = vmatpush1.bf16.msra.mxu0 0
        %311 = vmatprep.subr.bf16.mxu0 0
        %312 = vmatpush1.bf16.msra.mxu0 0
        %313 = vmatprep.subr.bf16.mxu0 0
        %314 = vmatpush1.bf16.msra.mxu0 0
        %315 = vmatprep.subr.bf16.mxu0 0
        %316 = vmatpush1.bf16.msra.mxu0 0
        %317 = vmatprep.subr.bf16.mxu0 0
        %318 = vmatpush1.bf16.msra.mxu0 0
        %319 = vmatprep.subr.bf16.mxu0 0
        %320 = vmatpush1.bf16.msra.mxu0 0
        %321 = vmatprep.subr.bf16.mxu0 0
        %322 = vmatpush1.bf16.msra.mxu0 0
        %323 = vmatprep.subr.bf16.mxu0 0
        %324 = vmatpush1.bf16.msra.mxu0 0
        %325 = vmatprep.mubr.bf16.mxu0 0
        %326 = vmatmul.mubr.bf16.gmra.mrb[0].mxu0 %v291
        %v327 = vpop.f32.mrb[0].mxu0
        %v328 = vadd.f32 %v287, %v327
        %v329 = vpop.f32.mrb[0].mxu0
        %v330 = vpop.f32.mrb[0].mxu0
        %v331 = vpop.f32.mrb[0].mxu0
        %332 = vdwg.mxu0
        %333 = vst.msk [vmem:[%s258] sm:$0xff] %vm289, %v328
        %335 = vrot.lane.b32.xlu0 %v328, 96
        %v336 = vpop.permute.xlu0 %335
        %338 = vst.msk [vmem:[%s265] sm:$0xff] %vm289, %v336
        %339 = vrot.lane.b32.xlu0 %v328, 64
        %v340 = vpop.permute.xlu0 %339
        %342 = vst.msk [vmem:[%s272] sm:$0xff] %vm289, %v340
        %s343 = sand.u32 %s103, 1
        %s344 = scalar_lea.sflag [#allocation4], %s343
        %s345 = sand.u32 %s103, 1
        %s346 = smul.addr %s345, 8
        %s347 = scalar_lea.vmem [#allocation7], %s346
        %s348 = sand.u32 %s27, 1
        %s349 = scalar_lea.sflag [#allocation9], %s348
        %s350 = sand.u32 %s129, 1
        %s351 = smul.addr %s350, 8
        %s352 = scalar_lea.vmem [#allocation8], %s351
        %s353 = sand.u32 %s27, 1
        %s354 = scalar_lea.sflag [#allocation9], %s353
        %s355 = sand.u32 %s155, 1
        %s356 = smul.addr %s355, 8
        %s357 = scalar_lea.vmem [#allocation10], %s356
        // Predicated region
        $region41: #{tpu_custom_call.1} parent=31 // pred_check
          %p358 = pneg %p113
        $region42: #{tpu_custom_call.1} parent=31 // pred_check_branch
          %360 = sbr.rel (%p358) target = $region44
        $region43: #{tpu_custom_call.1} parent=31 // pred_region
          %s362 = ssub.s32 128, 128
          %363 = vsyncadd %s344, %s362
          %s364 = smul.addr %s27, 128
          %s365 = scalar_lea.hbm %s3, %s364
          %s367 = sshll.u32 %s347, 4
          %s368 = int_to_ptr.vmem [resolvable:$true] %s367
          %370 = dma.vmem_to_hbm [thread:$0]  %s368, 128, %s365, %s344
        $region44: #{tpu_custom_call.1} parent=31 // pred_fallthru
          _
        // Predicated region
        $region45: #{tpu_custom_call.1} parent=31 // pred_check
          %p371 = pneg %p139
        $region46: #{tpu_custom_call.1} parent=31 // pred_check_branch
          %373 = sbr.rel (%p371) target = $region48
        $region47: #{tpu_custom_call.1} parent=31 // pred_region
          %s375 = ssub.s32 128, 128
          %376 = vsyncadd %s349, %s375
          %s377 = smul.addr %s27, 128
          %s378 = scalar_lea.hbm %s4, %s377
          %s380 = sshll.u32 %s352, 4
          %s381 = int_to_ptr.vmem [resolvable:$true] %s380
          %383 = dma.vmem_to_hbm [thread:$0]  %s381, 128, %s378, %s349
        $region48: #{tpu_custom_call.1} parent=31 // pred_fallthru
          _
        // Predicated region
        $region49: #{tpu_custom_call.1} parent=31 // pred_check
          %p384 = pneg %p165
        $region50: #{tpu_custom_call.1} parent=31 // pred_check_branch
          %386 = sbr.rel (%p384) target = $region52
        $region51: #{tpu_custom_call.1} parent=31 // pred_region
          %s388 = ssub.s32 128, 128
          %389 = vsyncadd %s354, %s388
          %s390 = smul.addr %s27, 128
          %s391 = scalar_lea.hbm %s5, %s390
          %s393 = sshll.u32 %s357, 4
          %s394 = int_to_ptr.vmem [resolvable:$true] %s393
          %396 = dma.vmem_to_hbm [thread:$0]  %s394, 128, %s391, %s354
        $region52: #{tpu_custom_call.1} parent=31 // pred_fallthru
          _
      $region32: #{tpu_custom_call.1} parent=5 // pred_fallthru
        _
      %p397 = scmp.le.s32.totalorder 2, %s22
      // Predicated region
      $region53: #{tpu_custom_call.1} parent=5 // pred_check
        %p398 = pneg %p397
      $region54: #{tpu_custom_call.1} parent=5 // pred_check_branch
        %400 = sbr.rel (%p398) target = $region56
      $region55: #{tpu_custom_call.1} parent=5 // pred_region
        %s401 = ssub.s32 %s22, 2
        // Predicated region
        $region57: #{tpu_custom_call.1} parent=55 // pred_check
          %p402 = pneg %p119
        $region58: #{tpu_custom_call.1} parent=55 // pred_check_branch
          %404 = sbr.rel (%p402) target = $region60
        $region59: #{tpu_custom_call.1} parent=55 // pred_region
          %s405 = sand.u32 %s104, 1
          %s406 = scalar_lea.sflag [#allocation4], %s405
          %s407 = sand.u32 %s104, 1
          %s408 = smul.addr %s407, 8
          %s409 = scalar_lea.vmem [#allocation7], %s408
          %410 = dma.done %s406, 128
        $region60: #{tpu_custom_call.1} parent=55 // pred_fallthru
          _
        // Predicated region
        $region61: #{tpu_custom_call.1} parent=55 // pred_check
          %p411 = pneg %p145
        $region62: #{tpu_custom_call.1} parent=55 // pred_check_branch
          %413 = sbr.rel (%p411) target = $region64
        $region63: #{tpu_custom_call.1} parent=55 // pred_region
          %s414 = sand.u32 %s28, 1
          %s415 = scalar_lea.sflag [#allocation9], %s414
          %s416 = sand.u32 %s130, 1
          %s417 = smul.addr %s416, 8
          %s418 = scalar_lea.vmem [#allocation8], %s417
          %419 = dma.done %s415, 128
        $region64: #{tpu_custom_call.1} parent=55 // pred_fallthru
          _
        // Predicated region
        $region65: #{tpu_custom_call.1} parent=55 // pred_check
          %p420 = pneg %p171
        $region66: #{tpu_custom_call.1} parent=55 // pred_check_branch
          %422 = sbr.rel (%p420) target = $region68
        $region67: #{tpu_custom_call.1} parent=55 // pred_region
          %s423 = sand.u32 %s28, 1
          %s424 = scalar_lea.sflag [#allocation9], %s423
          %s425 = sand.u32 %s156, 1
          %s426 = smul.addr %s425, 8
          %s427 = scalar_lea.vmem [#allocation10], %s426
          %428 = dma.done %s424, 128
        $region68: #{tpu_custom_call.1} parent=55 // pred_fallthru
          _
      $region56: #{tpu_custom_call.1} parent=5 // pred_fallthru
        _
    $region6: #{tpu_custom_call.1} parent=1 // loop_footer
      %s26 = sadd.s32 1, %s22
    $region7: #{tpu_custom_call.1} parent=1 // loop_footer_branch
      %21 = sbr.rel target = $region3
    $region8: #{tpu_custom_call.1} parent=1 // loop_exit
      _
    %429 = vsyncpa [#allocation3], 1
    %s430 = scalar_lea.sflag [#allocation3], 1
    %431 = vsyncpa %s430, 1
    %432 = vsyncpa [#allocation6], 1
    %433 = vsyncpa [#allocation4], 1
    %s434 = scalar_lea.sflag [#allocation4], 1
    %435 = vsyncpa %s434, 1
    %436 = vsyncpa [#allocation9], 1
    %s437 = scalar_lea.sflag [#allocation9], 1
    %438 = vsyncpa %s437, 1

</llo_original>
